<compile_context>
chip_gen: v7x
topology: tpu7x:2x2x1
jax: 0.10.0
libtpu: 0.0.40
codegen_flags: <defaults>
</compile_context>

<pallas_src>
import jax
import jax.numpy as jnp
from jax.experimental import pallas as pl
from jax.experimental.pallas import tpu as pltpu

# ----------------------------- problem sizes -----------------------------
N = 2                      # batch
C_IN = 4                   # input channels
H = W = 16                 # spatial
HW = H * W
ATTR_GROUPS = (3, 5, 4)    # abl.out_channels (logits per attribute)
A_TOTAL = sum(ATTR_GROUPS) # 12
C_FEAT = 32                # extractor.out_channels
OUT_CH = 5                 # classifier out_channels


# ------------------------------- kernel ----------------------------------
def joint_head_kernel(x_flat_ref, w_big_ref, b_abl_ref, w_hum_ref, b_tot_ref, out_ref):
    # Single MXU pass: columns [0:A_TOTAL] = abl logits (pre-bias),
    #                  columns [A_TOTAL:] = pooled-conv branch contribution.
    big = jnp.dot(x_flat_ref[...], w_big_ref[...],
                  preferred_element_type=jnp.float32)            # (N, A_TOTAL + OUT_CH)
    logits = big[:, :A_TOTAL] + b_abl_ref[...]                   # (N, A_TOTAL)
    conv_contrib = big[:, A_TOTAL:]                              # (N, OUT_CH)

    # Per-attribute softmax: statically unrolled per-group slices (sizes 3/5/4).
    probs = []
    start = 0
    for sz in ATTR_GROUPS:
        g = logits[:, start:start + sz]                          # (N, sz)
        m = jnp.max(g, axis=-1, keepdims=True)
        e = jnp.exp(g - m)
        s = jnp.sum(e, axis=-1, keepdims=True)
        probs.append(e / s)
        start += sz
    probs = jnp.concatenate(probs, axis=-1)                      # (N, A_TOTAL)

    out = (jnp.dot(probs, w_hum_ref[...], preferred_element_type=jnp.float32)
           + b_tot_ref[...] + conv_contrib)
    out_ref[...] = out.astype(out_ref.dtype)


# ------------------------------- wrapper ----------------------------------
@jax.jit
def joint_with_linear_head(x_nchw, folded):
    """x_nchw: (N, C_in, H, W) float32.  `folded`: precomputed/folded weights.
    Returns (N, OUT_CH) float32."""
    n, c, h, w = x_nchw.shape
    x_flat = x_nchw.reshape(n, c * h * w)                        # (N, C*H*W), NCHW order

    vmem = pl.BlockSpec(memory_space=pltpu.MemorySpace.VMEM)
    args = (x_flat, folded["w_big"], folded["b_abl"],
            folded["w_hum"], folded["b_total"])
    return pl.pallas_call(
        joint_head_kernel,
        out_shape=jax.ShapeDtypeStruct((n, OUT_CH), jnp.float32),
        in_specs=[vmem] * len(args),
        out_specs=vmem,
    )(*args)


# ------------------------- deterministic parameters -------------------------
def make_params():
    key = jax.random.PRNGKey(0)
    k_abl, k_ext, k_hum, k_cnv = jax.random.split(key, 4)

    # He (kaiming normal, fan_in) init, biases zero -- as in init_conv().
    in_abl = C_IN * H * W
    w_abl = jax.random.normal(k_abl, (in_abl, A_TOTAL), jnp.float32) * jnp.sqrt(2.0 / in_abl)
    b_abl = jnp.zeros((1, A_TOTAL), jnp.float32)

    w_ext = jax.random.normal(k_ext, (C_IN, C_FEAT), jnp.float32) * jnp.sqrt(2.0 / C_IN)
    b_ext = jnp.zeros((1, C_FEAT), jnp.float32)

    w_hum = jax.random.normal(k_hum, (A_TOTAL, OUT_CH), jnp.float32) * jnp.sqrt(2.0 / A_TOTAL)
    b_hum = jnp.zeros((1, OUT_CH), jnp.float32)

    w_cnv = jax.random.normal(k_cnv, (C_FEAT, OUT_CH), jnp.float32) * jnp.sqrt(2.0 / C_FEAT)

    return dict(w_abl=w_abl, b_abl=b_abl, w_ext=w_ext, b_ext=b_ext,
                w_hum=w_hum, b_hum=b_hum, w_cnv=w_cnv)


def fold_params(p):
    """One-time (host/XLA-side) algebraic folding of the conv branch and biases."""
    # conv branch: mean-pool commutes with 1x1 conv and the final linear
    #   mean_hw(conv1x1(x)) @ w_cnv = pooled @ (w_ext @ w_cnv) = x_flat @ W_pool
    w_cc = p["w_ext"] @ p["w_cnv"]                               # (C_IN, OUT_CH)
    w_pool = jnp.repeat(w_cc, HW, axis=0) / float(HW)            # (C_IN*HW, OUT_CH); row c*HW+s = w_cc[c]/HW
    w_big = jnp.concatenate([p["w_abl"], w_pool], axis=1)        # (C_IN*HW, A_TOTAL+OUT_CH)
    b_total = p["b_hum"] + p["b_ext"] @ p["w_cnv"]               # (1, OUT_CH)
    return dict(w_big=w_big, b_abl=p["b_abl"], w_hum=p["w_hum"], b_total=b_total)


# ------------------------------ pure-JAX reference ------------------------------
def reference(x_nchw, p):
    """Literal translation of the torch forward (un-folded)."""
    n, c, h, w = x_nchw.shape
    x_flat = x_nchw.reshape(n, c * h * w)
    logits = x_flat @ p["w_abl"] + p["b_abl"]
    probs = []
    start = 0
    for sz in ATTR_GROUPS:
        probs.append(jax.nn.softmax(logits[:, start:start + sz], axis=-1))
        start += sz
    human = jnp.concatenate(probs, axis=-1)
    x_img = jnp.transpose(x_nchw, (0, 2, 3, 1)).reshape(n, h * w, c)
    feat_maps = jnp.einsum('nsc,cf->nsf', x_img, p["w_ext"])
    conv_feat = jnp.mean(feat_maps, axis=1) + p["b_ext"]          # mean over (-1, -2)
    return human @ p["w_hum"] + p["b_hum"] + conv_feat @ p["w_cnv"]


if __name__ == "__main__":
    key = jax.random.PRNGKey(0)
    x = jax.random.normal(jax.random.fold_in(key, 7), (N, C_IN, H, W), jnp.float32)

    params = make_params()
    folded = fold_params(params)

    out = joint_with_linear_head(x, folded)
    out = jax.block_until_ready(out)

    ref = reference(x, params)
    assert out.shape == (N, OUT_CH)
    assert jnp.allclose(out, ref, atol=1e-4, rtol=1e-4), (out, ref)
    print("KERNEL_OK")
</pallas_src>

<mosaic_0001>
module attributes {stable_mosaic.version = 11 : i64} {
  func.func @joint_head_kernel(%arg0: memref<2x1024xf32, #tpu.memory_space<vmem>>, %arg1: memref<1024x17xf32, #tpu.memory_space<vmem>>, %arg2: memref<1x12xf32, #tpu.memory_space<vmem>>, %arg3: memref<12x5xf32, #tpu.memory_space<vmem>>, %arg4: memref<1x5xf32, #tpu.memory_space<vmem>>, %arg5: memref<2x5xf32, #tpu.memory_space<vmem>>) attributes {dimension_semantics = [], scalar_prefetch = 0 : i64, scratch_operands = 0 : i64, tpu.core_type = #tpu.core_type<tc>} {
    %c0 = arith.constant 0 : index
    %c0_0 = arith.constant 0 : index
    %0 = vector.load %arg0[%c0, %c0_0] : memref<2x1024xf32, #tpu.memory_space<vmem>>, vector<2x1024xf32>
    %c0_1 = arith.constant 0 : index
    %c0_2 = arith.constant 0 : index
    %1 = vector.load %arg1[%c0_1, %c0_2] : memref<1024x17xf32, #tpu.memory_space<vmem>>, vector<1024x17xf32>
    %cst = arith.constant dense<0.000000e+00> : vector<2x17xf32>
    %2 = tpu.matmul %0, %1, %cst {dimension_numbers = #tpu.dot_dimension_numbers<[1], [0], [0], [1], [0, 0, 1, 1], [], []>} : vector<2x1024xf32>, vector<1024x17xf32>, vector<2x17xf32> -> vector<2x17xf32>
    %3 = vector.extract_strided_slice %2 {offsets = [0, 0], sizes = [2, 12], strides = [1, 1]} : vector<2x17xf32> to vector<2x12xf32>
    %c0_3 = arith.constant 0 : index
    %c0_4 = arith.constant 0 : index
    %4 = vector.load %arg2[%c0_3, %c0_4] : memref<1x12xf32, #tpu.memory_space<vmem>>, vector<1x12xf32>
    %5 = vector.broadcast %4 : vector<1x12xf32> to vector<2x12xf32>
    %6 = arith.addf %3, %5 : vector<2x12xf32>
    %7 = vector.extract_strided_slice %2 {offsets = [0, 12], sizes = [2, 5], strides = [1, 1]} : vector<2x17xf32> to vector<2x5xf32>
    %8 = vector.extract_strided_slice %6 {offsets = [0, 0], sizes = [2, 3], strides = [1, 1]} : vector<2x12xf32> to vector<2x3xf32>
    %cst_5 = arith.constant dense<0xFF800000> : vector<2xf32>
    %9 = vector.multi_reduction <maximumf>, %8, %cst_5 [1] : vector<2x3xf32> to vector<2xf32>
    %10 = vector.shape_cast %9 : vector<2xf32> to vector<2x1xf32>
    %11 = vector.broadcast %10 : vector<2x1xf32> to vector<2x3xf32>
    %12 = arith.subf %8, %11 : vector<2x3xf32>
    %13 = math.exp %12 : vector<2x3xf32>
    %cst_6 = arith.constant dense<0.000000e+00> : vector<2xf32>
    %14 = vector.multi_reduction <add>, %13, %cst_6 [1] : vector<2x3xf32> to vector<2xf32>
    %15 = vector.shape_cast %14 : vector<2xf32> to vector<2x1xf32>
    %16 = vector.broadcast %15 : vector<2x1xf32> to vector<2x3xf32>
    %17 = arith.divf %13, %16 : vector<2x3xf32>
    %18 = vector.extract_strided_slice %6 {offsets = [0, 3], sizes = [2, 5], strides = [1, 1]} : vector<2x12xf32> to vector<2x5xf32>
    %cst_7 = arith.constant dense<0xFF800000> : vector<2xf32>
    %19 = vector.multi_reduction <maximumf>, %18, %cst_7 [1] : vector<2x5xf32> to vector<2xf32>
    %20 = vector.shape_cast %19 : vector<2xf32> to vector<2x1xf32>
    %21 = vector.broadcast %20 : vector<2x1xf32> to vector<2x5xf32>
    %22 = arith.subf %18, %21 : vector<2x5xf32>
    %23 = math.exp %22 : vector<2x5xf32>
    %cst_8 = arith.constant dense<0.000000e+00> : vector<2xf32>
    %24 = vector.multi_reduction <add>, %23, %cst_8 [1] : vector<2x5xf32> to vector<2xf32>
    %25 = vector.shape_cast %24 : vector<2xf32> to vector<2x1xf32>
    %26 = vector.broadcast %25 : vector<2x1xf32> to vector<2x5xf32>
    %27 = arith.divf %23, %26 : vector<2x5xf32>
    %28 = vector.extract_strided_slice %6 {offsets = [0, 8], sizes = [2, 4], strides = [1, 1]} : vector<2x12xf32> to vector<2x4xf32>
    %cst_9 = arith.constant dense<0xFF800000> : vector<2xf32>
    %29 = vector.multi_reduction <maximumf>, %28, %cst_9 [1] : vector<2x4xf32> to vector<2xf32>
    %30 = vector.shape_cast %29 : vector<2xf32> to vector<2x1xf32>
    %31 = vector.broadcast %30 : vector<2x1xf32> to vector<2x4xf32>
    %32 = arith.subf %28, %31 : vector<2x4xf32>
    %33 = math.exp %32 : vector<2x4xf32>
    %cst_10 = arith.constant dense<0.000000e+00> : vector<2xf32>
    %34 = vector.multi_reduction <add>, %33, %cst_10 [1] : vector<2x4xf32> to vector<2xf32>
    %35 = vector.shape_cast %34 : vector<2xf32> to vector<2x1xf32>
    %36 = vector.broadcast %35 : vector<2x1xf32> to vector<2x4xf32>
    %37 = arith.divf %33, %36 : vector<2x4xf32>
    %38 = tpu.concatenate %17, %27, %37 in 1 : vector<2x3xf32>, vector<2x5xf32>, vector<2x4xf32> -> vector<2x12xf32>
    %c0_11 = arith.constant 0 : index
    %c0_12 = arith.constant 0 : index
    %39 = vector.load %arg3[%c0_11, %c0_12] : memref<12x5xf32, #tpu.memory_space<vmem>>, vector<12x5xf32>
    %cst_13 = arith.constant dense<0.000000e+00> : vector<2x5xf32>
    %40 = tpu.matmul %38, %39, %cst_13 {dimension_numbers = #tpu.dot_dimension_numbers<[1], [0], [0], [1], [0, 0, 1, 1], [], []>} : vector<2x12xf32>, vector<12x5xf32>, vector<2x5xf32> -> vector<2x5xf32>
    %c0_14 = arith.constant 0 : index
    %c0_15 = arith.constant 0 : index
    %41 = vector.load %arg4[%c0_14, %c0_15] : memref<1x5xf32, #tpu.memory_space<vmem>>, vector<1x5xf32>
    %42 = vector.broadcast %41 : vector<1x5xf32> to vector<2x5xf32>
    %43 = arith.addf %40, %42 : vector<2x5xf32>
    %44 = arith.addf %43, %7 : vector<2x5xf32>
    %c0_16 = arith.constant 0 : index
    %c0_17 = arith.constant 0 : index
    %45 = vector.load %arg5[%c0_16, %c0_17] : memref<2x5xf32, #tpu.memory_space<vmem>>, vector<2x5xf32>
    tpu.vector_store %arg5[%c0_16, %c0_17], %44 {strides = array<i32>} : memref<2x5xf32, #tpu.memory_space<vmem>>, vector<2x5xf32>,
    return
  }
}

</mosaic_0001>

<llo_original>
// kernel: joint_with_linear_head.1
$region0: #{joint_with_linear_head.1}
  #allocation0 [shape = 'u32[]', space=smem, size = 0x4, offset = 0x4, fixed_abs, tag = 'smem constant byte address 0x4 - core index']
  #allocation1 [shape = 'u32[144,128]{1,0:T(1,128)}', space=vmem, size = 0x12000, scoped, tag = 'internal scratch']
  %s0 = inlined_call_operand.vmem [shape: f32[2,1024], index: 0, kind: input, shape index: {}]
  %s1 = inlined_call_operand.vmem [shape: f32[1024,17], index: 1, kind: input, shape index: {}]
  %s2 = inlined_call_operand.vmem [shape: f32[1,12], index: 2, kind: input, shape index: {}]
  %s3 = inlined_call_operand.vmem [shape: f32[12,5], index: 3, kind: input, shape index: {}]
  %s4 = inlined_call_operand.vmem [shape: f32[1,5], index: 4, kind: input, shape index: {}]
  %s5 = inlined_call_operand.hbm [shape: f32[2,5], index: 5, kind: output, shape index: {}]
  %s6 = sld [smem:[#allocation0]]
  $region30: #{joint_with_linear_head.1} parent=0
    _
  %s8 = ssub.s32 1, %s6
  %s9 = scalar_select 0, %s8, %s6
  $region1: #{joint_with_linear_head.1} parent=0
    #allocation2 [shape = 'u8[1024]{0}', space=vmem, size = 0x400, scoped, tag = 'output window, operand 0, single buffered']
    #allocation3 [shape = 's32[1]{0}', space=sflag, size = 0x4, scoped, tag = 'scoped memory for joint_with_linear_head.1']
    %10 = vsyncpa [#allocation3], 0
    // Predicated region
    $region2: #{joint_with_linear_head.1} parent=1 // pred_check
      _
    $region3: #{joint_with_linear_head.1} parent=1 // pred_check_branch
      %12 = sbr.rel (0) target = $region5
    $region4: #{joint_with_linear_head.1} parent=1 // pred_region
      _
    $region5: #{joint_with_linear_head.1} parent=1 // pred_fallthru
      _
    // Predicated region
    $region6: #{joint_with_linear_head.1} parent=1 // pred_check
      _
    $region7: #{joint_with_linear_head.1} parent=1 // pred_check_branch
      %14 = sbr.rel (0) target = $region9
    $region8: #{joint_with_linear_head.1} parent=1 // pred_region
      _
    $region9: #{joint_with_linear_head.1} parent=1 // pred_fallthru
      _
    // Predicated region
    $region10: #{joint_with_linear_head.1} parent=1 // pred_check
      _
    $region11: #{joint_with_linear_head.1} parent=1 // pred_check_branch
      %16 = sbr.rel (0) target = $region13
    $region12: #{joint_with_linear_head.1} parent=1 // pred_region
      _
    $region13: #{joint_with_linear_head.1} parent=1 // pred_fallthru
      _
    // Predicated region
    $region14: #{joint_with_linear_head.1} parent=1 // pred_check
      _
    $region15: #{joint_with_linear_head.1} parent=1 // pred_check_branch
      %18 = sbr.rel (0) target = $region17
    $region16: #{joint_with_linear_head.1} parent=1 // pred_region
      _
    $region17: #{joint_with_linear_head.1} parent=1 // pred_fallthru
      _
    // Predicated region
    $region18: #{joint_with_linear_head.1} parent=1 // pred_check
      _
    $region19: #{joint_with_linear_head.1} parent=1 // pred_check_branch
      %20 = sbr.rel (0) target = $region21
    $region20: #{joint_with_linear_head.1} parent=1 // pred_region
      _
    $region21: #{joint_with_linear_head.1} parent=1 // pred_fallthru
      _
    %v21 = vld [vmem:[%s0] sm:$0xff]
    %v22 = vld [vmem:[%s0 + $0x8] sm:$0xff]
    %v23 = vld [vmem:[%s1] sm:$0xff]
    %v24 = vld [vmem:[%s1 + $0x8] sm:$0xff]
    %v25 = vld [vmem:[%s1 + $0x10] sm:$0xff]
    %v26 = vld [vmem:[%s1 + $0x18] sm:$0xff]
    %v27 = vld [vmem:[%s1 + $0x20] sm:$0xff]
    %v28 = vld [vmem:[%s1 + $0x28] sm:$0xff]
    %v29 = vld [vmem:[%s1 + $0x30] sm:$0xff]
    %v30 = vld [vmem:[%s1 + $0x38] sm:$0xff]
    %v31 = vld [vmem:[%s1 + $0x40] sm:$0xff]
    %v32 = vld [vmem:[%s1 + $0x48] sm:$0xff]
    %v33 = vld [vmem:[%s1 + $0x50] sm:$0xff]
    %v34 = vld [vmem:[%s1 + $0x58] sm:$0xff]
    %v35 = vld [vmem:[%s1 + $0x60] sm:$0xff]
    %v36 = vld [vmem:[%s1 + $0x68] sm:$0xff]
    %v37 = vld [vmem:[%s1 + $0x70] sm:$0xff]
    %v38 = vld [vmem:[%s1 + $0x78] sm:$0xff]
    %v39 = vld [vmem:[%s1 + $0x80] sm:$0xff]
    %v40 = vld [vmem:[%s1 + $0x88] sm:$0xff]
    %v41 = vld [vmem:[%s1 + $0x90] sm:$0xff]
    %v42 = vld [vmem:[%s1 + $0x98] sm:$0xff]
    %v43 = vld [vmem:[%s1 + $0xa0] sm:$0xff]
    %v44 = vld [vmem:[%s1 + $0xa8] sm:$0xff]
    %v45 = vld [vmem:[%s1 + $0xb0] sm:$0xff]
    %v46 = vld [vmem:[%s1 + $0xb8] sm:$0xff]
    %v47 = vld [vmem:[%s1 + $0xc0] sm:$0xff]
    %v48 = vld [vmem:[%s1 + $0xc8] sm:$0xff]
    %v49 = vld [vmem:[%s1 + $0xd0] sm:$0xff]
    %v50 = vld [vmem:[%s1 + $0xd8] sm:$0xff]
    %v51 = vld [vmem:[%s1 + $0xe0] sm:$0xff]
    %v52 = vld [vmem:[%s1 + $0xe8] sm:$0xff]
    %v53 = vld [vmem:[%s1 + $0xf0] sm:$0xff]
    %v54 = vld [vmem:[%s1 + $0xf8] sm:$0xff]
    %v55 = vld [vmem:[%s1 + $0x100] sm:$0xff]
    %v56 = vld [vmem:[%s1 + $0x108] sm:$0xff]
    %v57 = vld [vmem:[%s1 + $0x110] sm:$0xff]
    %v58 = vld [vmem:[%s1 + $0x118] sm:$0xff]
    %v59 = vld [vmem:[%s1 + $0x120] sm:$0xff]
    %v60 = vld [vmem:[%s1 + $0x128] sm:$0xff]
    %v61 = vld [vmem:[%s1 + $0x130] sm:$0xff]
    %v62 = vld [vmem:[%s1 + $0x138] sm:$0xff]
    %v63 = vld [vmem:[%s1 + $0x140] sm:$0xff]
    %v64 = vld [vmem:[%s1 + $0x148] sm:$0xff]
    %v65 = vld [vmem:[%s1 + $0x150] sm:$0xff]
    %v66 = vld [vmem:[%s1 + $0x158] sm:$0xff]
    %v67 = vld [vmem:[%s1 + $0x160] sm:$0xff]
    %v68 = vld [vmem:[%s1 + $0x168] sm:$0xff]
    %v69 = vld [vmem:[%s1 + $0x170] sm:$0xff]
    %v70 = vld [vmem:[%s1 + $0x178] sm:$0xff]
    %v71 = vld [vmem:[%s1 + $0x180] sm:$0xff]
    %v72 = vld [vmem:[%s1 + $0x188] sm:$0xff]
    %v73 = vld [vmem:[%s1 + $0x190] sm:$0xff]
    %v74 = vld [vmem:[%s1 + $0x198] sm:$0xff]
    %v75 = vld [vmem:[%s1 + $0x1a0] sm:$0xff]
    %v76 = vld [vmem:[%s1 + $0x1a8] sm:$0xff]
    %v77 = vld [vmem:[%s1 + $0x1b0] sm:$0xff]
    %v78 = vld [vmem:[%s1 + $0x1b8] sm:$0xff]
    %v79 = vld [vmem:[%s1 + $0x1c0] sm:$0xff]
    %v80 = vld [vmem:[%s1 + $0x1c8] sm:$0xff]
    %v81 = vld [vmem:[%s1 + $0x1d0] sm:$0xff]
    %v82 = vld [vmem:[%s1 + $0x1d8] sm:$0xff]
    %v83 = vld [vmem:[%s1 + $0x1e0] sm:$0xff]
    %v84 = vld [vmem:[%s1 + $0x1e8] sm:$0xff]
    %v85 = vld [vmem:[%s1 + $0x1f0] sm:$0xff]
    %v86 = vld [vmem:[%s1 + $0x1f8] sm:$0xff]
    %v87 = vld [vmem:[%s1 + $0x200] sm:$0xff]
    %v88 = vld [vmem:[%s1 + $0x208] sm:$0xff]
    %v89 = vld [vmem:[%s1 + $0x210] sm:$0xff]
    %v90 = vld [vmem:[%s1 + $0x218] sm:$0xff]
    %v91 = vld [vmem:[%s1 + $0x220] sm:$0xff]
    %v92 = vld [vmem:[%s1 + $0x228] sm:$0xff]
    %v93 = vld [vmem:[%s1 + $0x230] sm:$0xff]
    %v94 = vld [vmem:[%s1 + $0x238] sm:$0xff]
    %v95 = vld [vmem:[%s1 + $0x240] sm:$0xff]
    %v96 = vld [vmem:[%s1 + $0x248] sm:$0xff]
    %v97 = vld [vmem:[%s1 + $0x250] sm:$0xff]
    %v98 = vld [vmem:[%s1 + $0x258] sm:$0xff]
    %v99 = vld [vmem:[%s1 + $0x260] sm:$0xff]
    %v100 = vld [vmem:[%s1 + $0x268] sm:$0xff]
    %v101 = vld [vmem:[%s1 + $0x270] sm:$0xff]
    %v102 = vld [vmem:[%s1 + $0x278] sm:$0xff]
    %v103 = vld [vmem:[%s1 + $0x280] sm:$0xff]
    %v104 = vld [vmem:[%s1 + $0x288] sm:$0xff]
    %v105 = vld [vmem:[%s1 + $0x290] sm:$0xff]
    %v106 = vld [vmem:[%s1 + $0x298] sm:$0xff]
    %v107 = vld [vmem:[%s1 + $0x2a0] sm:$0xff]
    %v108 = vld [vmem:[%s1 + $0x2a8] sm:$0xff]
    %v109 = vld [vmem:[%s1 + $0x2b0] sm:$0xff]
    %v110 = vld [vmem:[%s1 + $0x2b8] sm:$0xff]
    %v111 = vld [vmem:[%s1 + $0x2c0] sm:$0xff]
    %v112 = vld [vmem:[%s1 + $0x2c8] sm:$0xff]
    %v113 = vld [vmem:[%s1 + $0x2d0] sm:$0xff]
    %v114 = vld [vmem:[%s1 + $0x2d8] sm:$0xff]
    %v115 = vld [vmem:[%s1 + $0x2e0] sm:$0xff]
    %v116 = vld [vmem:[%s1 + $0x2e8] sm:$0xff]
    %v117 = vld [vmem:[%s1 + $0x2f0] sm:$0xff]
    %v118 = vld [vmem:[%s1 + $0x2f8] sm:$0xff]
    %v119 = vld [vmem:[%s1 + $0x300] sm:$0xff]
    %v120 = vld [vmem:[%s1 + $0x308] sm:$0xff]
    %v121 = vld [vmem:[%s1 + $0x310] sm:$0xff]
    %v122 = vld [vmem:[%s1 + $0x318] sm:$0xff]
    %v123 = vld [vmem:[%s1 + $0x320] sm:$0xff]
    %v124 = vld [vmem:[%s1 + $0x328] sm:$0xff]
    %v125 = vld [vmem:[%s1 + $0x330] sm:$0xff]
    %v126 = vld [vmem:[%s1 + $0x338] sm:$0xff]
    %v127 = vld [vmem:[%s1 + $0x340] sm:$0xff]
    %v128 = vld [vmem:[%s1 + $0x348] sm:$0xff]
    %v129 = vld [vmem:[%s1 + $0x350] sm:$0xff]
    %v130 = vld [vmem:[%s1 + $0x358] sm:$0xff]
    %v131 = vld [vmem:[%s1 + $0x360] sm:$0xff]
    %v132 = vld [vmem:[%s1 + $0x368] sm:$0xff]
    %v133 = vld [vmem:[%s1 + $0x370] sm:$0xff]
    %v134 = vld [vmem:[%s1 + $0x378] sm:$0xff]
    %v135 = vld [vmem:[%s1 + $0x380] sm:$0xff]
    %v136 = vld [vmem:[%s1 + $0x388] sm:$0xff]
    %v137 = vld [vmem:[%s1 + $0x390] sm:$0xff]
    %v138 = vld [vmem:[%s1 + $0x398] sm:$0xff]
    %v139 = vld [vmem:[%s1 + $0x3a0] sm:$0xff]
    %v140 = vld [vmem:[%s1 + $0x3a8] sm:$0xff]
    %v141 = vld [vmem:[%s1 + $0x3b0] sm:$0xff]
    %v142 = vld [vmem:[%s1 + $0x3b8] sm:$0xff]
    %v143 = vld [vmem:[%s1 + $0x3c0] sm:$0xff]
    %v144 = vld [vmem:[%s1 + $0x3c8] sm:$0xff]
    %v145 = vld [vmem:[%s1 + $0x3d0] sm:$0xff]
    %v146 = vld [vmem:[%s1 + $0x3d8] sm:$0xff]
    %v147 = vld [vmem:[%s1 + $0x3e0] sm:$0xff]
    %v148 = vld [vmem:[%s1 + $0x3e8] sm:$0xff]
    %v149 = vld [vmem:[%s1 + $0x3f0] sm:$0xff]
    %v150 = vld [vmem:[%s1 + $0x3f8] sm:$0xff]
    %v153 = vcombine.high %v21, %v21
    %v155 = vunpack.c.l.s4 1983009808
    %v156 = vunpack.c.0.s8 %v155
    %v157 = vlaneseq
    %v158 = vshrl.u32 %v157, 7
    %v159 = vsub.s32 %v156, %v158
    %v160 = vrot.slane %v21, %v159
    %v162 = vunpack.c.l.s4 1983009808
    %v163 = vunpack.c.0.s8 %v162
    %v164 = vlaneseq
    %v165 = vshrl.u32 %v164, 7
    %v166 = vsub.s32 %v163, %v165
    %v167 = vrot.slane %v153, %v166
    %v168 = vcombine.high %v160, %v160
    %v169 = vcombine.high %v167, %v167
    %v170 = vcombine.high %v22, %v22
    %v172 = vunpack.c.l.s4 1983009808
    %v173 = vunpack.c.0.s8 %v172
    %v174 = vlaneseq
    %v175 = vshrl.u32 %v174, 7
    %v176 = vsub.s32 %v173, %v175
    %v177 = vrot.slane %v22, %v176
    %v179 = vunpack.c.l.s4 1983009808
    %v180 = vunpack.c.0.s8 %v179
    %v181 = vlaneseq
    %v182 = vshrl.u32 %v181, 7
    %v183 = vsub.s32 %v180, %v182
    %v184 = vrot.slane %v170, %v183
    %v185 = vcombine.high %v177, %v177
    %v186 = vcombine.high %v184, %v184
    %195 = vmatprep.subr.mxu0 0.0
    %196 = vmatpush1.msra.mxu0 %v23
    %197 = vmatprep.subr.mxu0 0.0
    %198 = vmatpush1.msra.mxu0 %v24
    %199 = vmatprep.subr.mxu0 0.0
    %200 = vmatpush1.msra.mxu0 %v25
    %201 = vmatprep.subr.mxu0 0.0
    %202 = vmatpush1.msra.mxu0 %v26
    %203 = vmatprep.subr.mxu0 0.0
    %204 = vmatpush1.msra.mxu0 %v27
    %205 = vmatprep.subr.mxu0 0.0
    %206 = vmatpush1.msra.mxu0 %v28
    %207 = vmatprep.subr.mxu0 0.0
    %208 = vmatpush1.msra.mxu0 %v29
    %209 = vmatprep.subr.mxu0 0.0
    %210 = vmatpush1.msra.mxu0 %v30
    %211 = vmatprep.subr.mxu0 0.0
    %212 = vmatpush1.msra.mxu0 %v31
    %213 = vmatprep.subr.mxu0 0.0
    %214 = vmatpush1.msra.mxu0 %v32
    %215 = vmatprep.subr.mxu0 0.0
    %216 = vmatpush1.msra.mxu0 %v33
    %217 = vmatprep.subr.mxu0 0.0
    %218 = vmatpush1.msra.mxu0 %v34
    %219 = vmatprep.subr.mxu0 0.0
    %220 = vmatpush1.msra.mxu0 %v35
    %221 = vmatprep.subr.mxu0 0.0
    %222 = vmatpush1.msra.mxu0 %v36
    %223 = vmatprep.subr.mxu0 0.0
    %224 = vmatpush1.msra.mxu0 %v37
    %225 = vmatprep.subr.mxu0 0.0
    %226 = vmatpush1.msra.mxu0 %v38
    %227 = vmatprep.subr.mxu0 0.0
    %228 = vmatpush1.msra.mxu0 %v39
    %229 = vmatprep.subr.mxu0 0.0
    %230 = vmatpush1.msra.mxu0 %v40
    %231 = vmatprep.subr.mxu0 0.0
    %232 = vmatpush1.msra.mxu0 %v41
    %233 = vmatprep.subr.mxu0 0.0
    %234 = vmatpush1.msra.mxu0 %v42
    %235 = vmatprep.subr.mxu0 0.0
    %236 = vmatpush1.msra.mxu0 %v43
    %237 = vmatprep.subr.mxu0 0.0
    %238 = vmatpush1.msra.mxu0 %v44
    %239 = vmatprep.subr.mxu0 0.0
    %240 = vmatpush1.msra.mxu0 %v45
    %241 = vmatprep.subr.mxu0 0.0
    %242 = vmatpush1.msra.mxu0 %v46
    %243 = vmatprep.subr.mxu0 0.0
    %244 = vmatpush1.msra.mxu0 %v47
    %245 = vmatprep.subr.mxu0 0.0
    %246 = vmatpush1.msra.mxu0 %v48
    %247 = vmatprep.subr.mxu0 0.0
    %248 = vmatpush1.msra.mxu0 %v49
    %249 = vmatprep.subr.mxu0 0.0
    %250 = vmatpush1.msra.mxu0 %v50
    %251 = vmatprep.subr.mxu0 0.0
    %252 = vmatpush1.msra.mxu0 %v51
    %253 = vmatprep.subr.mxu0 0.0
    %254 = vmatpush1.msra.mxu0 %v52
    %255 = vmatprep.subr.mxu0 0.0
    %256 = vmatpush1.msra.mxu0 %v53
    %257 = vmatprep.subr.mxu0 0.0
    %258 = vmatpush1.msra.mxu0 %v54
    %259 = vmatprep.mubr.f32.mxu0 %v168
    %260 = vmatmul.mubr.f32.gmra.mrb[0].mxu0 %v160
    %v261 = vpop.f32.mrb[0].mxu0
    %v262 = vadd.f32 0.0, %v261
    %v263 = vpop.f32.mrb[0].mxu0
    %264 = vdwg.mxu0
    %265 = vmatprep.subr.mxu0 0.0
    %266 = vmatpush1.msra.mxu0 %v55
    %267 = vmatprep.subr.mxu0 0.0
    %268 = vmatpush1.msra.mxu0 %v56
    %269 = vmatprep.subr.mxu0 0.0
    %270 = vmatpush1.msra.mxu0 %v57
    %271 = vmatprep.subr.mxu0 0.0
    %272 = vmatpush1.msra.mxu0 %v58
    %273 = vmatprep.subr.mxu0 0.0
    %274 = vmatpush1.msra.mxu0 %v59
    %275 = vmatprep.subr.mxu0 0.0
    %276 = vmatpush1.msra.mxu0 %v60
    %277 = vmatprep.subr.mxu0 0.0
    %278 = vmatpush1.msra.mxu0 %v61
    %279 = vmatprep.subr.mxu0 0.0
    %280 = vmatpush1.msra.mxu0 %v62
    %281 = vmatprep.subr.mxu0 0.0
    %282 = vmatpush1.msra.mxu0 %v63
    %283 = vmatprep.subr.mxu0 0.0
    %284 = vmatpush1.msra.mxu0 %v64
    %285 = vmatprep.subr.mxu0 0.0
    %286 = vmatpush1.msra.mxu0 %v65
    %287 = vmatprep.subr.mxu0 0.0
    %288 = vmatpush1.msra.mxu0 %v66
    %289 = vmatprep.subr.mxu0 0.0
    %290 = vmatpush1.msra.mxu0 %v67
    %291 = vmatprep.subr.mxu0 0.0
    %292 = vmatpush1.msra.mxu0 %v68
    %293 = vmatprep.subr.mxu0 0.0
    %294 = vmatpush1.msra.mxu0 %v69
    %295 = vmatprep.subr.mxu0 0.0
    %296 = vmatpush1.msra.mxu0 %v70
    %297 = vmatprep.subr.mxu0 0.0
    %298 = vmatpush1.msra.mxu0 %v71
    %299 = vmatprep.subr.mxu0 0.0
    %300 = vmatpush1.msra.mxu0 %v72
    %301 = vmatprep.subr.mxu0 0.0
    %302 = vmatpush1.msra.mxu0 %v73
    %303 = vmatprep.subr.mxu0 0.0
    %304 = vmatpush1.msra.mxu0 %v74
    %305 = vmatprep.subr.mxu0 0.0
    %306 = vmatpush1.msra.mxu0 %v75
    %307 = vmatprep.subr.mxu0 0.0
    %308 = vmatpush1.msra.mxu0 %v76
    %309 = vmatprep.subr.mxu0 0.0
    %310 = vmatpush1.msra.mxu0 %v77
    %311 = vmatprep.subr.mxu0 0.0
    %312 = vmatpush1.msra.mxu0 %v78
    %313 = vmatprep.subr.mxu0 0.0
    %314 = vmatpush1.msra.mxu0 %v79
    %315 = vmatprep.subr.mxu0 0.0
    %316 = vmatpush1.msra.mxu0 %v80
    %317 = vmatprep.subr.mxu0 0.0
    %318 = vmatpush1.msra.mxu0 %v81
    %319 = vmatprep.subr.mxu0 0.0
    %320 = vmatpush1.msra.mxu0 %v82
    %321 = vmatprep.subr.mxu0 0.0
    %322 = vmatpush1.msra.mxu0 %v83
    %323 = vmatprep.subr.mxu0 0.0
    %324 = vmatpush1.msra.mxu0 %v84
    %325 = vmatprep.subr.mxu0 0.0
    %326 = vmatpush1.msra.mxu0 %v85
    %327 = vmatprep.subr.mxu0 0.0
    %328 = vmatpush1.msra.mxu0 %v86
    %329 = vmatprep.mubr.f32.mxu0 %v169
    %330 = vmatmul.mubr.f32.gmra.mrb[0].mxu0 %v167
    %v331 = vpop.f32.mrb[0].mxu0
    %v332 = vadd.f32 %v262, %v331
    %v333 = vpop.f32.mrb[0].mxu0
    %334 = vdwg.mxu0
    %335 = vmatprep.subr.mxu0 0.0
    %336 = vmatpush1.msra.mxu0 %v87
    %337 = vmatprep.subr.mxu0 0.0
    %338 = vmatpush1.msra.mxu0 %v88
    %339 = vmatprep.subr.mxu0 0.0
    %340 = vmatpush1.msra.mxu0 %v89
    %341 = vmatprep.subr.mxu0 0.0
    %342 = vmatpush1.msra.mxu0 %v90
    %343 = vmatprep.subr.mxu0 0.0
    %344 = vmatpush1.msra.mxu0 %v91
    %345 = vmatprep.subr.mxu0 0.0
    %346 = vmatpush1.msra.mxu0 %v92
    %347 = vmatprep.subr.mxu0 0.0
    %348 = vmatpush1.msra.mxu0 %v93
    %349 = vmatprep.subr.mxu0 0.0
    %350 = vmatpush1.msra.mxu0 %v94
    %351 = vmatprep.subr.mxu0 0.0
    %352 = vmatpush1.msra.mxu0 %v95
    %353 = vmatprep.subr.mxu0 0.0
    %354 = vmatpush1.msra.mxu0 %v96
    %355 = vmatprep.subr.mxu0 0.0
    %356 = vmatpush1.msra.mxu0 %v97
    %357 = vmatprep.subr.mxu0 0.0
    %358 = vmatpush1.msra.mxu0 %v98
    %359 = vmatprep.subr.mxu0 0.0
    %360 = vmatpush1.msra.mxu0 %v99
    %361 = vmatprep.subr.mxu0 0.0
    %362 = vmatpush1.msra.mxu0 %v100
    %363 = vmatprep.subr.mxu0 0.0
    %364 = vmatpush1.msra.mxu0 %v101
    %365 = vmatprep.subr.mxu0 0.0
    %366 = vmatpush1.msra.mxu0 %v102
    %367 = vmatprep.subr.mxu0 0.0
    %368 = vmatpush1.msra.mxu0 %v103
    %369 = vmatprep.subr.mxu0 0.0
    %370 = vmatpush1.msra.mxu0 %v104
    %371 = vmatprep.subr.mxu0 0.0
    %372 = vmatpush1.msra.mxu0 %v105
    %373 = vmatprep.subr.mxu0 0.0
    %374 = vmatpush1.msra.mxu0 %v106
    %375 = vmatprep.subr.mxu0 0.0
    %376 = vmatpush1.msra.mxu0 %v107
    %377 = vmatprep.subr.mxu0 0.0
    %378 = vmatpush1.msra.mxu0 %v108
    %379 = vmatprep.subr.mxu0 0.0
    %380 = vmatpush1.msra.mxu0 %v109
    %381 = vmatprep.subr.mxu0 0.0
    %382 = vmatpush1.msra.mxu0 %v110
    %383 = vmatprep.subr.mxu0 0.0
    %384 = vmatpush1.msra.mxu0 %v111
    %385 = vmatprep.subr.mxu0 0.0
    %386 = vmatpush1.msra.mxu0 %v112
    %387 = vmatprep.subr.mxu0 0.0
    %388 = vmatpush1.msra.mxu0 %v113
    %389 = vmatprep.subr.mxu0 0.0
    %390 = vmatpush1.msra.mxu0 %v114
    %391 = vmatprep.subr.mxu0 0.0
    %392 = vmatpush1.msra.mxu0 %v115
    %393 = vmatprep.subr.mxu0 0.0
    %394 = vmatpush1.msra.mxu0 %v116
    %395 = vmatprep.subr.mxu0 0.0
    %396 = vmatpush1.msra.mxu0 %v117
    %397 = vmatprep.subr.mxu0 0.0
    %398 = vmatpush1.msra.mxu0 %v118
    %399 = vmatprep.mubr.f32.mxu0 %v185
    %400 = vmatmul.mubr.f32.gmra.mrb[0].mxu0 %v177
    %v401 = vpop.f32.mrb[0].mxu0
    %v402 = vadd.f32 %v332, %v401
    %v403 = vpop.f32.mrb[0].mxu0
    %404 = vdwg.mxu0
    %405 = vmatprep.subr.mxu0 0.0
    %406 = vmatpush1.msra.mxu0 %v119
    %407 = vmatprep.subr.mxu0 0.0
    %408 = vmatpush1.msra.mxu0 %v120
    %409 = vmatprep.subr.mxu0 0.0
    %410 = vmatpush1.msra.mxu0 %v121
    %411 = vmatprep.subr.mxu0 0.0
    %412 = vmatpush1.msra.mxu0 %v122
    %413 = vmatprep.subr.mxu0 0.0
    %414 = vmatpush1.msra.mxu0 %v123
    %415 = vmatprep.subr.mxu0 0.0
    %416 = vmatpush1.msra.mxu0 %v124
    %417 = vmatprep.subr.mxu0 0.0
    %418 = vmatpush1.msra.mxu0 %v125
    %419 = vmatprep.subr.mxu0 0.0
    %420 = vmatpush1.msra.mxu0 %v126
    %421 = vmatprep.subr.mxu0 0.0
    %422 = vmatpush1.msra.mxu0 %v127
    %423 = vmatprep.subr.mxu0 0.0
    %424 = vmatpush1.msra.mxu0 %v128
    %425 = vmatprep.subr.mxu0 0.0
    %426 = vmatpush1.msra.mxu0 %v129
    %427 = vmatprep.subr.mxu0 0.0
    %428 = vmatpush1.msra.mxu0 %v130
    %429 = vmatprep.subr.mxu0 0.0
    %430 = vmatpush1.msra.mxu0 %v131
    %431 = vmatprep.subr.mxu0 0.0
    %432 = vmatpush1.msra.mxu0 %v132
    %433 = vmatprep.subr.mxu0 0.0
    %434 = vmatpush1.msra.mxu0 %v133
    %435 = vmatprep.subr.mxu0 0.0
    %436 = vmatpush1.msra.mxu0 %v134
    %437 = vmatprep.subr.mxu0 0.0
    %438 = vmatpush1.msra.mxu0 %v135
    %439 = vmatprep.subr.mxu0 0.0
    %440 = vmatpush1.msra.mxu0 %v136
    %441 = vmatprep.subr.mxu0 0.0
    %442 = vmatpush1.msra.mxu0 %v137
    %443 = vmatprep.subr.mxu0 0.0
    %444 = vmatpush1.msra.mxu0 %v138
    %445 = vmatprep.subr.mxu0 0.0
    %446 = vmatpush1.msra.mxu0 %v139
    %447 = vmatprep.subr.mxu0 0.0
    %448 = vmatpush1.msra.mxu0 %v140
    %449 = vmatprep.subr.mxu0 0.0
    %450 = vmatpush1.msra.mxu0 %v141
    %451 = vmatprep.subr.mxu0 0.0
    %452 = vmatpush1.msra.mxu0 %v142
    %453 = vmatprep.subr.mxu0 0.0
    %454 = vmatpush1.msra.mxu0 %v143
    %455 = vmatprep.subr.mxu0 0.0
    %456 = vmatpush1.msra.mxu0 %v144
    %457 = vmatprep.subr.mxu0 0.0
    %458 = vmatpush1.msra.mxu0 %v145
    %459 = vmatprep.subr.mxu0 0.0
    %460 = vmatpush1.msra.mxu0 %v146
    %461 = vmatprep.subr.mxu0 0.0
    %462 = vmatpush1.msra.mxu0 %v147
    %463 = vmatprep.subr.mxu0 0.0
    %464 = vmatpush1.msra.mxu0 %v148
    %465 = vmatprep.subr.mxu0 0.0
    %466 = vmatpush1.msra.mxu0 %v149
    %467 = vmatprep.subr.mxu0 0.0
    %468 = vmatpush1.msra.mxu0 %v150
    %469 = vmatprep.mubr.f32.mxu0 %v186
    %470 = vmatmul.mubr.f32.gmra.mrb[0].mxu0 %v184
    %v471 = vpop.f32.mrb[0].mxu0
    %v472 = vadd.f32 %v402, %v471
    %v473 = vpop.f32.mrb[0].mxu0
    %474 = vdwg.mxu0
    %v475 = vld [vmem:[%s2] sm:$0x1]
    %v477 = vlaneseq
    %v478 = vshrl.u32 %v477, 7
    %v479 = vsub.s32 0, %v478
    %v480 = vrot.slane %v475, %v479
    %v482 = vadd.f32 %v472, %v480
    %vm483 = vcmask 17408
    %v484 = vsel %vm483, %v482, -inf
    %485 = vmax.xlane.f32.xlu0 %v484
    %v486 = vpop.xlane.xlu0 %485
    %v487 = vsub.f32 %v482, %v486
    %v488 = vmul.f32 %v487, 1.442695
    %v489 = vpow.pop %v488
    %v490 = vsel %vm483, %v489, 0.0
    %491 = vadd.xlane.f32.xlu0 %v490
    %v492 = vpop.xlane.xlu0 %491
    %v493 = vrcp.pop %v492
    %v494 = vmul.f32 %v489, %v493
    %vm495 = vcmask 58392
    %v496 = vsel %vm495, %v482, -inf
    %497 = vmax.xlane.f32.xlu0 %v496
    %v498 = vpop.xlane.xlu0 %497
    %v499 = vsub.f32 %v482, %v498
    %v500 = vmul.f32 %v499, 1.442695
    %v501 = vpow.pop %v500
    %503 = vrot.lane.b32.xlu0 %v501, 125
    %v504 = vpop.permute.xlu0 %503
    %vm506 = vcmask 33792
    %v507 = vsel %vm506, %v504, 0.0
    %508 = vadd.xlane.f32.xlu0 %v507
    %v509 = vpop.xlane.xlu0 %508
    %v510 = vrcp.pop %v509
    %v511 = vmul.f32 %v501, %v510
    %vm512 = vcmask 91200
    %v513 = vsel %vm512, %v482, -inf
    %514 = vmax.xlane.f32.xlu0 %v513
    %v515 = vpop.xlane.xlu0 %514
    %v516 = vsub.f32 %v482, %v515
    %v517 = vmul.f32 %v516, 1.442695
    %v518 = vpow.pop %v517
    %520 = vrot.lane.b32.xlu0 %v518, 120
    %v521 = vpop.permute.xlu0 %520
    %vm523 = vcmask 25600
    %v524 = vsel %vm523, %v521, 0.0
    %525 = vadd.xlane.f32.xlu0 %v524
    %v526 = vpop.xlane.xlu0 %525
    %v527 = vrcp.pop %v526
    %v528 = vmul.f32 %v518, %v527
    %vm529 = vcmask 23552
    %v530 = vsel %vm529, %v494, %v511
    %vm531 = vcmask 64512
    %v532 = vsel %vm531, %v530, %v528
    %v533 = vld [vmem:[%s3] sm:$0xff]
    %v534 = vld [vmem:[%s3 + $0x8] sm:$0xf]
    %v535 = vld [vmem:[%s4] sm:$0x1]
    %v537 = vlaneseq
    %v538 = vshrl.u32 %v537, 7
    %v539 = vsub.s32 0, %v538
    %v540 = vrot.slane %v535, %v539
    %vm542 = vcmask 97280
    %v544 = vsel %vm542, %v532, 0
    %vm546 = vcmask 1043456
    %v548 = vsel %vm546, %v534, 0
    %550 = vmatprep.subr.mxu0 0.0
    %551 = vmatpush1.msra.mxu0 %v533
    %552 = vmatprep.subr.mxu0 0.0
    %553 = vmatpush1.msra.mxu0 %v548
    %554 = vmatprep.subr.mxu0 0.0
    %555 = vmatpush1.msra.mxu0 0.0
    %556 = vmatprep.subr.mxu0 0.0
    %557 = vmatpush1.msra.mxu0 0.0
    %558 = vmatprep.subr.mxu0 0.0
    %559 = vmatpush1.msra.mxu0 0.0
    %560 = vmatprep.subr.mxu0 0.0
    %561 = vmatpush1.msra.mxu0 0.0
    %562 = vmatprep.subr.mxu0 0.0
    %563 = vmatpush1.msra.mxu0 0.0
    %564 = vmatprep.subr.mxu0 0.0
    %565 = vmatpush1.msra.mxu0 0.0
    %566 = vmatprep.subr.mxu0 0.0
    %567 = vmatpush1.msra.mxu0 0.0
    %568 = vmatprep.subr.mxu0 0.0
    %569 = vmatpush1.msra.mxu0 0.0
    %570 = vmatprep.subr.mxu0 0.0
    %571 = vmatpush1.msra.mxu0 0.0
    %572 = vmatprep.subr.mxu0 0.0
    %573 = vmatpush1.msra.mxu0 0.0
    %574 = vmatprep.subr.mxu0 0.0
    %575 = vmatpush1.msra.mxu0 0.0
    %576 = vmatprep.subr.mxu0 0.0
    %577 = vmatpush1.msra.mxu0 0.0
    %578 = vmatprep.subr.mxu0 0.0
    %579 = vmatpush1.msra.mxu0 0.0
    %580 = vmatprep.subr.mxu0 0.0
    %581 = vmatpush1.msra.mxu0 0.0
    %582 = vmatprep.subr.mxu0 0.0
    %583 = vmatpush1.msra.mxu0 0.0
    %584 = vmatprep.subr.mxu0 0.0
    %585 = vmatpush1.msra.mxu0 0.0
    %586 = vmatprep.subr.mxu0 0.0
    %587 = vmatpush1.msra.mxu0 0.0
    %588 = vmatprep.subr.mxu0 0.0
    %589 = vmatpush1.msra.mxu0 0.0
    %590 = vmatprep.subr.mxu0 0.0
    %591 = vmatpush1.msra.mxu0 0.0
    %592 = vmatprep.subr.mxu0 0.0
    %593 = vmatpush1.msra.mxu0 0.0
    %594 = vmatprep.subr.mxu0 0.0
    %595 = vmatpush1.msra.mxu0 0.0
    %596 = vmatprep.subr.mxu0 0.0
    %597 = vmatpush1.msra.mxu0 0.0
    %598 = vmatprep.subr.mxu0 0.0
    %599 = vmatpush1.msra.mxu0 0.0
    %600 = vmatprep.subr.mxu0 0.0
    %601 = vmatpush1.msra.mxu0 0.0
    %602 = vmatprep.subr.mxu0 0.0
    %603 = vmatpush1.msra.mxu0 0.0
    %604 = vmatprep.subr.mxu0 0.0
    %605 = vmatpush1.msra.mxu0 0.0
    %606 = vmatprep.subr.mxu0 0.0
    %607 = vmatpush1.msra.mxu0 0.0
    %608 = vmatprep.subr.mxu0 0.0
    %609 = vmatpush1.msra.mxu0 0.0
    %610 = vmatprep.subr.mxu0 0.0
    %611 = vmatpush1.msra.mxu0 0.0
    %612 = vmatprep.subr.mxu0 0.0
    %613 = vmatpush1.msra.mxu0 0.0
    %614 = vmatprep.mubr.f32.mxu0 0.0
    %615 = vmatmul.mubr.f32.gmra.mrb[0].mxu0 %v544
    %v616 = vpop.f32.mrb[0].mxu0
    %v617 = vadd.f32 %v540, %v616
    %v618 = vpop.f32.mrb[0].mxu0
    %619 = vdwg.mxu0
    %621 = vrot.lane.b32.xlu0 %v472, 116
    %v622 = vpop.permute.xlu0 %621
    %v624 = vadd.f32 %v617, %v622
    %625 = vst.msk [vmem:[#allocation2] sm:$0x3] %vm506, %v624
    // Predicated region
    $region22: #{joint_with_linear_head.1} parent=1 // pred_check
      _
    $region23: #{joint_with_linear_head.1} parent=1 // pred_check_branch
      %627 = sbr.rel (0) target = $region25
    $region24: #{joint_with_linear_head.1} parent=1 // pred_region
      %s629 = ssub.s32 32, 32
      %630 = vsyncadd [#allocation3], %s629
      %s632 = sshll.u32 [#allocation2], 4
      %s633 = int_to_ptr.vmem [resolvable:$true] %s632
      %635 = dma.vmem_to_hbm [thread:$0]  %s633, 32, %s5, [#allocation3]
    $region25: #{joint_with_linear_head.1} parent=1 // pred_fallthru
      _
    // Predicated region
    $region26: #{joint_with_linear_head.1} parent=1 // pred_check
      _
    $region27: #{joint_with_linear_head.1} parent=1 // pred_check_branch
      %637 = sbr.rel (0) target = $region29
    $region28: #{joint_with_linear_head.1} parent=1 // pred_region
      %638 = dma.done [#allocation3], 32
    $region29: #{joint_with_linear_head.1} parent=1 // pred_fallthru
      _
    %639 = vsyncpa [#allocation3], 1

</llo_original>
